<compile_context>
chip_gen: v7x
topology: tpu7x:2x2x1
jax: 0.10.0
libtpu: 0.0.40
codegen_flags: <defaults>
</compile_context>

<pallas_src>
import jax
import jax.numpy as jnp
from jax.experimental import pallas as pl
from jax.experimental.pallas import tpu as pltpu

# ---- small, module-consistent sizes -----------------------------------------
B, T, F = 2, 8, 8      # batch, sequence, features (F >= 6 because of [...,4:6])
H = 32                 # rnn hidden size (dqn_config['rnn'])
S_OUT = 7              # RnnStream(7, ...) output width
A = 2                  # synthetic pre_cat: number of actions
Z = 16                 # synthetic pre_cat: number of atoms
TEMPERATURE = 1.0      # dqn_config['temperature']
INV_TEMPERATURE = 1.0 / TEMPERATURE
OBS_T = 5              # obs = x[:, -5:, :]

NPRE = 2 * OBS_T       # 10  (flattened width of one 2-col obs slice)
SLAB_W = 3 * NPRE      # 30  (obs1 | obs2 | obs0 flattened)
AZ = A * Z             # 32

# packed parameter slab layout
PRE_ROW0 = F + H               # 40: start of packed pre_cat weight [30, 96]
BIAS_ROW = PRE_ROW0 + SLAB_W   # 70: b_h (0:32) | b_pre (32:64) | b_d (64)
WD_ROW = BIAS_ROW + 1          # 71: folded head vector w_d (0:32)
P_ROWS = WD_ROW + 1            # 72
P_COLS = 3 * AZ                # 96

DATA_COLS = 32                 # rows 0:T*B -> xt (cols 0:F), rows T*B:T*B+B -> obs slab (cols 0:30)


def dqn_cat_kernel(data_ref, p_ref, out_ref):
    # --- packed parameter views (static slices, no data movement) -----------
    w_ih = p_ref[0:F, 0:H]                               # [F, H]
    w_hh = p_ref[F:F + H, 0:H]                           # [H, H]
    w_pre = p_ref[PRE_ROW0:PRE_ROW0 + SLAB_W, :]         # [30, 96]
    brow = p_ref[BIAS_ROW:BIAS_ROW + 1, :]               # [1, 96]
    b_h = brow[:, 0:H]
    b_pre = brow[:, H:H + AZ]
    b_d = brow[:, H + AZ:H + AZ + 1]
    w_d = p_ref[WD_ROW:WD_ROW + 1, 0:H]                  # [1, H]

    xt = data_ref[0:T * B, 0:F]                          # [T*B, F] time-major
    slab = data_ref[T * B:T * B + B, 0:SLAB_W]           # [B, 30]

    # --- RNN: input projection hoisted out of the recurrent loop ------------
    xh = jnp.dot(xt, w_ih, preferred_element_type=jnp.float32) + b_h  # [T*B,H]
    h = jnp.zeros((B, H), jnp.float32)
    for t in range(T):                                   # static unroll, T small
        h = jnp.tanh(xh[t * B:(t + 1) * B, :] +
                     jnp.dot(h, w_hh, preferred_element_type=jnp.float32))

    # --- folded head: 2-class softmax == sigmoid(scaled logit difference) ---
    d = jnp.sum(h * w_d, axis=-1, keepdims=True) + b_d   # [B, 1]
    p0 = 1.0 / (1.0 + jnp.exp(-d))
    p1 = 1.0 - p0

    # --- pre_cat: one matmul on the obs slab, p0/p1 combine afterwards ------
    # part[:, 0:32]  = obs1_flat @ W_info
    # part[:, 32:64] = obs2_flat @ W_info
    # part[:, 64:96] = obs0_flat @ W_obs
    part = jnp.dot(slab, w_pre, preferred_element_type=jnp.float32)   # [B, 96]
    logits_q = (p0 * part[:, 0:AZ] + p1 * part[:, AZ:2 * AZ]
                + part[:, 2 * AZ:3 * AZ] + b_pre)                     # [B, 32]

    info_flat = p0 * slab[:, 0:NPRE] + p1 * slab[:, NPRE:2 * NPRE]    # [B, 10]

    # --- per-action softmax over atoms via static lane slices ---------------
    l0 = logits_q[:, 0:Z]
    l1 = logits_q[:, Z:2 * Z]
    e0 = jnp.exp(l0 - jnp.max(l0, axis=-1, keepdims=True))
    e1 = jnp.exp(l1 - jnp.max(l1, axis=-1, keepdims=True))
    q0 = e0 * pl.reciprocal(jnp.sum(e0, axis=-1, keepdims=True), approx=True)
    q1 = e1 * pl.reciprocal(jnp.sum(e1, axis=-1, keepdims=True), approx=True)

    # fused output: [ q (32 lanes) | info (10 lanes) ]
    out_ref[:, 0:Z] = q0
    out_ref[:, Z:2 * Z] = q1
    out_ref[:, 2 * Z:2 * Z + NPRE] = info_flat


def dqn_cat_forward(x, params):
    """x: [B, T, F] -> (q [B, A, Z], info [B, OBS_T, 2])."""
    (W_ih, W_hh, b_h, W_s, b_s, W_l, b_l, W_obs, W_info, b_pre) = params

    # --- wrapper-side layout plumbing ----------------------------------------
    # data slab: time-major x rows + batch-major obs slab
    xt = x.transpose(1, 0, 2).reshape(T * B, F)                    # row = t*B + b
    obs = x[:, T - OBS_T:, :]                                      # [B, 5, F]
    obs1 = obs[:, :, 2:4].reshape(B, NPRE)
    obs2 = obs[:, :, 4:6].reshape(B, NPRE)
    obs0 = obs[:, :, 0:2].reshape(B, NPRE)
    slab = jnp.concatenate([obs1, obs2, obs0], axis=-1)            # [B, 30]
    data = jnp.zeros((T * B + B, DATA_COLS), jnp.float32)
    data = data.at[0:T * B, 0:F].set(xt)
    data = data.at[T * B:, 0:SLAB_W].set(slab)

    # folded head: d = h @ w_d + b_d with temperature baked in
    dwl = W_l[:, 0] - W_l[:, 1]                                    # [7]
    w_d = (W_s @ dwl) * INV_TEMPERATURE                            # [H]
    b_d = (jnp.dot(b_s[0], dwl) + (b_l[0, 0] - b_l[0, 1])) * INV_TEMPERATURE

    # single packed parameter slab.  NOTE: the block-diagonal layout of the
    # pre_cat weight must match the [obs1|obs2|obs0] slab order above.
    pslab = jnp.zeros((P_ROWS, P_COLS), jnp.float32)
    pslab = pslab.at[0:F, 0:H].set(W_ih)
    pslab = pslab.at[F:F + H, 0:H].set(W_hh)
    pslab = pslab.at[PRE_ROW0:PRE_ROW0 + NPRE, 0:AZ].set(W_info)
    pslab = pslab.at[PRE_ROW0 + NPRE:PRE_ROW0 + 2 * NPRE, AZ:2 * AZ].set(W_info)
    pslab = pslab.at[PRE_ROW0 + 2 * NPRE:PRE_ROW0 + 3 * NPRE, 2 * AZ:3 * AZ].set(W_obs)
    pslab = pslab.at[BIAS_ROW, 0:H].set(b_h[0])
    pslab = pslab.at[BIAS_ROW, H:H + AZ].set(b_pre[0])
    pslab = pslab.at[BIAS_ROW, H + AZ].set(b_d)
    pslab = pslab.at[WD_ROW, 0:H].set(w_d)

    vmem = pl.BlockSpec(memory_space=pltpu.MemorySpace.VMEM)
    out = pl.pallas_call(
        dqn_cat_kernel,
        out_shape=jax.ShapeDtypeStruct((B, 2 * Z + NPRE), jnp.float32),
        in_specs=[vmem, vmem],
        out_specs=vmem,
        cost_estimate=pl.CostEstimate(flops=54_000, transcendentals=600,
                                      bytes_accessed=30_300),
    )(data, pslab)

    q = out[:, 0:AZ].reshape(B, A, Z)
    info = out[:, AZ:AZ + NPRE].reshape(B, OBS_T, 2)
    return q, info


def init_params(key):
    ks = jax.random.split(key, 7)

    def w(k, shape, scale=0.1):
        return (scale * jax.random.normal(k, shape)).astype(jnp.float32)

    W_ih = w(ks[0], (F, H))
    W_hh = w(ks[1], (H, H))
    b_h = jnp.zeros((1, H), jnp.float32)
    W_s = w(ks[2], (H, S_OUT))
    b_s = jnp.zeros((1, S_OUT), jnp.float32)
    W_l = w(ks[3], (S_OUT, 2))
    b_l = jnp.zeros((1, 2), jnp.float32)
    W_obs = w(ks[4], (NPRE, AZ))    # pre_cat weight rows for obs[:, :, 0:2]
    W_info = w(ks[5], (NPRE, AZ))   # pre_cat weight rows for info
    b_pre = w(ks[6], (1, AZ))
    return (W_ih, W_hh, b_h, W_s, b_s, W_l, b_l, W_obs, W_info, b_pre)


def reference(x, params):
    """Pure-JAX reference matching the PyTorch training-mode forward."""
    W_ih, W_hh, b_h, W_s, b_s, W_l, b_l, W_obs, W_info, b_pre = params
    h = jnp.zeros((B, H), jnp.float32)
    for t in range(T):
        h = jnp.tanh(x[:, t, :] @ W_ih + h @ W_hh + b_h)
    s = h @ W_s + b_s
    p = jax.nn.softmax((s @ W_l + b_l) / TEMPERATURE, axis=-1)
    obs = x[:, -OBS_T:, :]
    obs1 = obs[:, :, 2:4]
    obs2 = obs[:, :, 4:6]
    info = p[:, 0:1][:, None, :] * obs1 + p[:, 1:2][:, None, :] * obs2
    cat_x = jnp.concatenate([obs[:, :, 0:2], info], axis=-1).reshape(B, -1)  # [B, 20]
    # reconstruct the flattened pre_cat weight in torch's (t, feature) order
    W_pre = jnp.concatenate(
        [jnp.stack([W_obs[2 * t], W_obs[2 * t + 1],
                    W_info[2 * t], W_info[2 * t + 1]], axis=0)
         for t in range(OBS_T)], axis=0)                                     # [20, A*Z]
    logits_q = cat_x @ W_pre + b_pre
    q = jax.nn.softmax(logits_q.reshape(B, A, Z), axis=-1)
    return q, info


if __name__ == "__main__":
    key = jax.random.PRNGKey(0)
    kx, kp = jax.random.split(key)
    x = jax.random.normal(kx, (B, T, F), dtype=jnp.float32)
    params = init_params(kp)

    q, info = jax.jit(dqn_cat_forward)(x, params)
    jax.block_until_ready((q, info))

    q_ref, info_ref = reference(x, params)
    # q tolerance covers pl.reciprocal(approx=True) in the atom softmax.
    assert jnp.allclose(q, q_ref, atol=5e-3), "q mismatch"
    assert jnp.allclose(info, info_ref, atol=1e-4), "info mismatch"
    print("KERNEL_OK")
</pallas_src>

<mosaic_0001>
module attributes {stable_mosaic.version = 11 : i64} {
  func.func @dqn_cat_kernel(%arg0: memref<18x32xf32, #tpu.memory_space<vmem>>, %arg1: memref<72x96xf32, #tpu.memory_space<vmem>>, %arg2: memref<2x42xf32, #tpu.memory_space<vmem>>) attributes {dimension_semantics = [], scalar_prefetch = 0 : i64, scratch_operands = 0 : i64, tpu.core_type = #tpu.core_type<tc>} {
    %c0 = arith.constant 0 : index
    %c0_0 = arith.constant 0 : index
    %0 = vector.load %arg1[%c0, %c0_0] : memref<72x96xf32, #tpu.memory_space<vmem>>, vector<8x32xf32>
    %c8 = arith.constant 8 : index
    %c0_1 = arith.constant 0 : index
    %1 = vector.load %arg1[%c8, %c0_1] : memref<72x96xf32, #tpu.memory_space<vmem>>, vector<32x32xf32>
    %c40 = arith.constant 40 : index
    %c0_2 = arith.constant 0 : index
    %2 = vector.load %arg1[%c40, %c0_2] : memref<72x96xf32, #tpu.memory_space<vmem>>, vector<30x96xf32>
    %c70 = arith.constant 70 : index
    %c0_3 = arith.constant 0 : index
    %3 = vector.load %arg1[%c70, %c0_3] : memref<72x96xf32, #tpu.memory_space<vmem>>, vector<1x96xf32>
    %4 = vector.extract_strided_slice %3 {offsets = [0, 0], sizes = [1, 32], strides = [1, 1]} : vector<1x96xf32> to vector<1x32xf32>
    %5 = vector.extract_strided_slice %3 {offsets = [0, 32], sizes = [1, 32], strides = [1, 1]} : vector<1x96xf32> to vector<1x32xf32>
    %6 = vector.extract_strided_slice %3 {offsets = [0, 64], sizes = [1, 1], strides = [1, 1]} : vector<1x96xf32> to vector<1x1xf32>
    %c71 = arith.constant 71 : index
    %c0_4 = arith.constant 0 : index
    %7 = vector.load %arg1[%c71, %c0_4] : memref<72x96xf32, #tpu.memory_space<vmem>>, vector<1x32xf32>
    %c0_5 = arith.constant 0 : index
    %c0_6 = arith.constant 0 : index
    %8 = vector.load %arg0[%c0_5, %c0_6] : memref<18x32xf32, #tpu.memory_space<vmem>>, vector<16x8xf32>
    %c16 = arith.constant 16 : index
    %c0_7 = arith.constant 0 : index
    %9 = vector.load %arg0[%c16, %c0_7] : memref<18x32xf32, #tpu.memory_space<vmem>>, vector<2x30xf32>
    %cst = arith.constant dense<0.000000e+00> : vector<16x32xf32>
    %10 = tpu.matmul %8, %0, %cst {dimension_numbers = #tpu.dot_dimension_numbers<[1], [0], [0], [1], [0, 0, 1, 1], [], []>} : vector<16x8xf32>, vector<8x32xf32>, vector<16x32xf32> -> vector<16x32xf32>
    %11 = vector.broadcast %4 : vector<1x32xf32> to vector<16x32xf32>
    %12 = arith.addf %10, %11 : vector<16x32xf32>
    %cst_8 = arith.constant 0.000000e+00 : f32
    %13 = vector.broadcast %cst_8 : f32 to vector<2x32xf32>
    %14 = vector.extract_strided_slice %12 {offsets = [0, 0], sizes = [2, 32], strides = [1, 1]} : vector<16x32xf32> to vector<2x32xf32>
    %cst_9 = arith.constant dense<0.000000e+00> : vector<2x32xf32>
    %15 = tpu.matmul %13, %1, %cst_9 {dimension_numbers = #tpu.dot_dimension_numbers<[1], [0], [0], [1], [0, 0, 1, 1], [], []>} : vector<2x32xf32>, vector<32x32xf32>, vector<2x32xf32> -> vector<2x32xf32>
    %16 = arith.addf %14, %15 : vector<2x32xf32>
    %17 = math.tanh %16 : vector<2x32xf32>
    %18 = vector.extract_strided_slice %12 {offsets = [2, 0], sizes = [2, 32], strides = [1, 1]} : vector<16x32xf32> to vector<2x32xf32>
    %cst_10 = arith.constant dense<0.000000e+00> : vector<2x32xf32>
    %19 = tpu.matmul %17, %1, %cst_10 {dimension_numbers = #tpu.dot_dimension_numbers<[1], [0], [0], [1], [0, 0, 1, 1], [], []>} : vector<2x32xf32>, vector<32x32xf32>, vector<2x32xf32> -> vector<2x32xf32>
    %20 = arith.addf %18, %19 : vector<2x32xf32>
    %21 = math.tanh %20 : vector<2x32xf32>
    %22 = vector.extract_strided_slice %12 {offsets = [4, 0], sizes = [2, 32], strides = [1, 1]} : vector<16x32xf32> to vector<2x32xf32>
    %cst_11 = arith.constant dense<0.000000e+00> : vector<2x32xf32>
    %23 = tpu.matmul %21, %1, %cst_11 {dimension_numbers = #tpu.dot_dimension_numbers<[1], [0], [0], [1], [0, 0, 1, 1], [], []>} : vector<2x32xf32>, vector<32x32xf32>, vector<2x32xf32> -> vector<2x32xf32>
    %24 = arith.addf %22, %23 : vector<2x32xf32>
    %25 = math.tanh %24 : vector<2x32xf32>
    %26 = vector.extract_strided_slice %12 {offsets = [6, 0], sizes = [2, 32], strides = [1, 1]} : vector<16x32xf32> to vector<2x32xf32>
    %cst_12 = arith.constant dense<0.000000e+00> : vector<2x32xf32>
    %27 = tpu.matmul %25, %1, %cst_12 {dimension_numbers = #tpu.dot_dimension_numbers<[1], [0], [0], [1], [0, 0, 1, 1], [], []>} : vector<2x32xf32>, vector<32x32xf32>, vector<2x32xf32> -> vector<2x32xf32>
    %28 = arith.addf %26, %27 : vector<2x32xf32>
    %29 = math.tanh %28 : vector<2x32xf32>
    %30 = vector.extract_strided_slice %12 {offsets = [8, 0], sizes = [2, 32], strides = [1, 1]} : vector<16x32xf32> to vector<2x32xf32>
    %cst_13 = arith.constant dense<0.000000e+00> : vector<2x32xf32>
    %31 = tpu.matmul %29, %1, %cst_13 {dimension_numbers = #tpu.dot_dimension_numbers<[1], [0], [0], [1], [0, 0, 1, 1], [], []>} : vector<2x32xf32>, vector<32x32xf32>, vector<2x32xf32> -> vector<2x32xf32>
    %32 = arith.addf %30, %31 : vector<2x32xf32>
    %33 = math.tanh %32 : vector<2x32xf32>
    %34 = vector.extract_strided_slice %12 {offsets = [10, 0], sizes = [2, 32], strides = [1, 1]} : vector<16x32xf32> to vector<2x32xf32>
    %cst_14 = arith.constant dense<0.000000e+00> : vector<2x32xf32>
    %35 = tpu.matmul %33, %1, %cst_14 {dimension_numbers = #tpu.dot_dimension_numbers<[1], [0], [0], [1], [0, 0, 1, 1], [], []>} : vector<2x32xf32>, vector<32x32xf32>, vector<2x32xf32> -> vector<2x32xf32>
    %36 = arith.addf %34, %35 : vector<2x32xf32>
    %37 = math.tanh %36 : vector<2x32xf32>
    %38 = vector.extract_strided_slice %12 {offsets = [12, 0], sizes = [2, 32], strides = [1, 1]} : vector<16x32xf32> to vector<2x32xf32>
    %cst_15 = arith.constant dense<0.000000e+00> : vector<2x32xf32>
    %39 = tpu.matmul %37, %1, %cst_15 {dimension_numbers = #tpu.dot_dimension_numbers<[1], [0], [0], [1], [0, 0, 1, 1], [], []>} : vector<2x32xf32>, vector<32x32xf32>, vector<2x32xf32> -> vector<2x32xf32>
    %40 = arith.addf %38, %39 : vector<2x32xf32>
    %41 = math.tanh %40 : vector<2x32xf32>
    %42 = vector.extract_strided_slice %12 {offsets = [14, 0], sizes = [2, 32], strides = [1, 1]} : vector<16x32xf32> to vector<2x32xf32>
    %cst_16 = arith.constant dense<0.000000e+00> : vector<2x32xf32>
    %43 = tpu.matmul %41, %1, %cst_16 {dimension_numbers = #tpu.dot_dimension_numbers<[1], [0], [0], [1], [0, 0, 1, 1], [], []>} : vector<2x32xf32>, vector<32x32xf32>, vector<2x32xf32> -> vector<2x32xf32>
    %44 = arith.addf %42, %43 : vector<2x32xf32>
    %45 = math.tanh %44 : vector<2x32xf32>
    %46 = vector.broadcast %7 : vector<1x32xf32> to vector<2x32xf32>
    %47 = arith.mulf %45, %46 : vector<2x32xf32>
    %cst_17 = arith.constant dense<0.000000e+00> : vector<2xf32>
    %48 = vector.multi_reduction <add>, %47, %cst_17 [1] : vector<2x32xf32> to vector<2xf32>
    %49 = vector.shape_cast %48 : vector<2xf32> to vector<2x1xf32>
    %50 = vector.broadcast %6 : vector<1x1xf32> to vector<2x1xf32>
    %51 = arith.addf %49, %50 : vector<2x1xf32>
    %cst_18 = arith.constant 0.000000e+00 : f32
    %52 = vector.broadcast %cst_18 : f32 to vector<2x1xf32>
    %53 = arith.subf %52, %51 : vector<2x1xf32>
    %54 = math.exp %53 : vector<2x1xf32>
    %cst_19 = arith.constant 1.000000e+00 : f32
    %55 = vector.broadcast %cst_19 : f32 to vector<2x1xf32>
    %56 = arith.addf %55, %54 : vector<2x1xf32>
    %cst_20 = arith.constant 1.000000e+00 : f32
    %57 = vector.broadcast %cst_20 : f32 to vector<2x1xf32>
    %58 = arith.divf %57, %56 : vector<2x1xf32>
    %cst_21 = arith.constant 1.000000e+00 : f32
    %59 = vector.broadcast %cst_21 : f32 to vector<2x1xf32>
    %60 = arith.subf %59, %58 : vector<2x1xf32>
    %cst_22 = arith.constant dense<0.000000e+00> : vector<2x96xf32>
    %61 = tpu.matmul %9, %2, %cst_22 {dimension_numbers = #tpu.dot_dimension_numbers<[1], [0], [0], [1], [0, 0, 1, 1], [], []>} : vector<2x30xf32>, vector<30x96xf32>, vector<2x96xf32> -> vector<2x96xf32>
    %62 = vector.extract_strided_slice %61 {offsets = [0, 0], sizes = [2, 32], strides = [1, 1]} : vector<2x96xf32> to vector<2x32xf32>
    %63 = vector.broadcast %58 : vector<2x1xf32> to vector<2x32xf32>
    %64 = arith.mulf %63, %62 : vector<2x32xf32>
    %65 = vector.extract_strided_slice %61 {offsets = [0, 32], sizes = [2, 32], strides = [1, 1]} : vector<2x96xf32> to vector<2x32xf32>
    %66 = vector.broadcast %60 : vector<2x1xf32> to vector<2x32xf32>
    %67 = arith.mulf %66, %65 : vector<2x32xf32>
    %68 = arith.addf %64, %67 : vector<2x32xf32>
    %69 = vector.extract_strided_slice %61 {offsets = [0, 64], sizes = [2, 32], strides = [1, 1]} : vector<2x96xf32> to vector<2x32xf32>
    %70 = arith.addf %68, %69 : vector<2x32xf32>
    %71 = vector.broadcast %5 : vector<1x32xf32> to vector<2x32xf32>
    %72 = arith.addf %70, %71 : vector<2x32xf32>
    %73 = vector.extract_strided_slice %9 {offsets = [0, 0], sizes = [2, 10], strides = [1, 1]} : vector<2x30xf32> to vector<2x10xf32>
    %74 = vector.broadcast %58 : vector<2x1xf32> to vector<2x10xf32>
    %75 = arith.mulf %74, %73 : vector<2x10xf32>
    %76 = vector.extract_strided_slice %9 {offsets = [0, 10], sizes = [2, 10], strides = [1, 1]} : vector<2x30xf32> to vector<2x10xf32>
    %77 = vector.broadcast %60 : vector<2x1xf32> to vector<2x10xf32>
    %78 = arith.mulf %77, %76 : vector<2x10xf32>
    %79 = arith.addf %75, %78 : vector<2x10xf32>
    %80 = vector.extract_strided_slice %72 {offsets = [0, 0], sizes = [2, 16], strides = [1, 1]} : vector<2x32xf32> to vector<2x16xf32>
    %81 = vector.extract_strided_slice %72 {offsets = [0, 16], sizes = [2, 16], strides = [1, 1]} : vector<2x32xf32> to vector<2x16xf32>
    %cst_23 = arith.constant dense<0xFF800000> : vector<2xf32>
    %82 = vector.multi_reduction <maximumf>, %80, %cst_23 [1] : vector<2x16xf32> to vector<2xf32>
    %83 = vector.shape_cast %82 : vector<2xf32> to vector<2x1xf32>
    %84 = vector.broadcast %83 : vector<2x1xf32> to vector<2x16xf32>
    %85 = arith.subf %80, %84 : vector<2x16xf32>
    %86 = math.exp %85 : vector<2x16xf32>
    %cst_24 = arith.constant dense<0xFF800000> : vector<2xf32>
    %87 = vector.multi_reduction <maximumf>, %81, %cst_24 [1] : vector<2x16xf32> to vector<2xf32>
    %88 = vector.shape_cast %87 : vector<2xf32> to vector<2x1xf32>
    %89 = vector.broadcast %88 : vector<2x1xf32> to vector<2x16xf32>
    %90 = arith.subf %81, %89 : vector<2x16xf32>
    %91 = math.exp %90 : vector<2x16xf32>
    %cst_25 = arith.constant dense<0.000000e+00> : vector<2xf32>
    %92 = vector.multi_reduction <add>, %86, %cst_25 [1] : vector<2x16xf32> to vector<2xf32>
    %93 = vector.shape_cast %92 : vector<2xf32> to vector<2x1xf32>
    %94 = tpu.reciprocal %93 {approx = true} : vector<2x1xf32> -> vector<2x1xf32>
    %95 = vector.broadcast %94 : vector<2x1xf32> to vector<2x16xf32>
    %96 = arith.mulf %86, %95 : vector<2x16xf32>
    %cst_26 = arith.constant dense<0.000000e+00> : vector<2xf32>
    %97 = vector.multi_reduction <add>, %91, %cst_26 [1] : vector<2x16xf32> to vector<2xf32>
    %98 = vector.shape_cast %97 : vector<2xf32> to vector<2x1xf32>
    %99 = tpu.reciprocal %98 {approx = true} : vector<2x1xf32> -> vector<2x1xf32>
    %100 = vector.broadcast %99 : vector<2x1xf32> to vector<2x16xf32>
    %101 = arith.mulf %91, %100 : vector<2x16xf32>
    %c0_27 = arith.constant 0 : index
    %c0_28 = arith.constant 0 : index
    %102 = vector.load %arg2[%c0_27, %c0_28] : memref<2x42xf32, #tpu.memory_space<vmem>>, vector<2x16xf32>
    tpu.vector_store %arg2[%c0_27, %c0_28], %96 {strides = array<i32>} : memref<2x42xf32, #tpu.memory_space<vmem>>, vector<2x16xf32>,
    %c0_29 = arith.constant 0 : index
    %c16_30 = arith.constant 16 : index
    %103 = vector.load %arg2[%c0_29, %c16_30] : memref<2x42xf32, #tpu.memory_space<vmem>>, vector<2x16xf32>
    tpu.vector_store %arg2[%c0_29, %c16_30], %101 {strides = array<i32>} : memref<2x42xf32, #tpu.memory_space<vmem>>, vector<2x16xf32>,
    %c0_31 = arith.constant 0 : index
    %c32 = arith.constant 32 : index
    %104 = vector.load %arg2[%c0_31, %c32] : memref<2x42xf32, #tpu.memory_space<vmem>>, vector<2x10xf32>
    tpu.vector_store %arg2[%c0_31, %c32], %79 {strides = array<i32>} : memref<2x42xf32, #tpu.memory_space<vmem>>, vector<2x10xf32>,
    return
  }
}

</mosaic_0001>

<llo_original>
// kernel: dqn_cat_forward.1
$region0: #{dqn_cat_forward.1}
  #allocation0 [shape = 'u32[]', space=smem, size = 0x4, offset = 0x4, fixed_abs, tag = 'smem constant byte address 0x4 - core index']
  #allocation1 [shape = 'u32[144,128]{1,0:T(1,128)}', space=vmem, size = 0x12000, scoped, tag = 'internal scratch']
  %s0 = inlined_call_operand.vmem [shape: f32[18,32], index: 0, kind: input, shape index: {}]
  %s1 = inlined_call_operand.vmem [shape: f32[72,96], index: 1, kind: input, shape index: {}]
  %s2 = inlined_call_operand.vmem [shape: f32[2,42], index: 2, kind: output, shape index: {}]
  %s3 = sld [smem:[#allocation0]]
  $region18: #{dqn_cat_forward.1} parent=0
    _
  %s5 = ssub.s32 1, %s3
  %s6 = scalar_select 0, %s5, %s3
  // Predicated region
  $region2: #{dqn_cat_forward.1} parent=0 // pred_check
    _
  $region3: #{dqn_cat_forward.1} parent=0 // pred_check_branch
    %8 = sbr.rel (0) target = $region5
  $region4: #{dqn_cat_forward.1} parent=0 // pred_region
    _
  $region5: #{dqn_cat_forward.1} parent=0 // pred_fallthru
    _
  // Predicated region
  $region6: #{dqn_cat_forward.1} parent=0 // pred_check
    _
  $region7: #{dqn_cat_forward.1} parent=0 // pred_check_branch
    %10 = sbr.rel (0) target = $region9
  $region8: #{dqn_cat_forward.1} parent=0 // pred_region
    _
  $region9: #{dqn_cat_forward.1} parent=0 // pred_fallthru
    _
  %v11 = vld [vmem:[%s1] sm:$0xff]
  %v12 = vld [vmem:[%s1 + $0x8] sm:$0xff]
  %v13 = vld [vmem:[%s1 + $0x10] sm:$0xff]
  %v14 = vld [vmem:[%s1 + $0x18] sm:$0xff]
  %v15 = vld [vmem:[%s1 + $0x20] sm:$0xff]
  %v16 = vld [vmem:[%s1 + $0x28] sm:$0xff]
  %v17 = vld [vmem:[%s1 + $0x30] sm:$0xff]
  %v18 = vld [vmem:[%s1 + $0x38] sm:$0xff]
  %v19 = vld [vmem:[%s1 + $0x40] sm:$0x3f]
  %v20 = vld [vmem:[%s1 + $0x46] sm:$0x1]
  %v21 = vld [vmem:[%s1 + $0x47] sm:$0x1]
  %v22 = vld [vmem:[%s0] sm:$0xff]
  %v23 = vld [vmem:[%s0 + $0x8] sm:$0xff]
  %v24 = vld [vmem:[%s0 + $0x10] sm:$0x3]
  %v25 = vlaneseq
  %v26 = vshrl.u32 %v25, 7
  %v27 = vsub.s32 0, %v26
  %v28 = vrot.slane %v20, %v27
  %vm29 = vcmask 64512
  %v31 = vsel %vm29, %v22, 0
  %v34 = vsel %vm29, %v23, 0
  %36 = vmatprep.subr.mxu0 0.0
  %37 = vmatpush1.msra.mxu0 %v11
  %38 = vmatprep.subr.mxu0 0.0
  %39 = vmatpush1.msra.mxu0 0.0
  %40 = vmatprep.subr.mxu0 0.0
  %41 = vmatpush1.msra.mxu0 0.0
  %42 = vmatprep.subr.mxu0 0.0
  %43 = vmatpush1.msra.mxu0 0.0
  %44 = vmatprep.subr.mxu0 0.0
  %45 = vmatpush1.msra.mxu0 0.0
  %46 = vmatprep.subr.mxu0 0.0
  %47 = vmatpush1.msra.mxu0 0.0
  %48 = vmatprep.subr.mxu0 0.0
  %49 = vmatpush1.msra.mxu0 0.0
  %50 = vmatprep.subr.mxu0 0.0
  %51 = vmatpush1.msra.mxu0 0.0
  %52 = vmatprep.subr.mxu0 0.0
  %53 = vmatpush1.msra.mxu0 0.0
  %54 = vmatprep.subr.mxu0 0.0
  %55 = vmatpush1.msra.mxu0 0.0
  %56 = vmatprep.subr.mxu0 0.0
  %57 = vmatpush1.msra.mxu0 0.0
  %58 = vmatprep.subr.mxu0 0.0
  %59 = vmatpush1.msra.mxu0 0.0
  %60 = vmatprep.subr.mxu0 0.0
  %61 = vmatpush1.msra.mxu0 0.0
  %62 = vmatprep.subr.mxu0 0.0
  %63 = vmatpush1.msra.mxu0 0.0
  %64 = vmatprep.subr.mxu0 0.0
  %65 = vmatpush1.msra.mxu0 0.0
  %66 = vmatprep.subr.mxu0 0.0
  %67 = vmatpush1.msra.mxu0 0.0
  %68 = vmatprep.subr.mxu0 0.0
  %69 = vmatpush1.msra.mxu0 0.0
  %70 = vmatprep.subr.mxu0 0.0
  %71 = vmatpush1.msra.mxu0 0.0
  %72 = vmatprep.subr.mxu0 0.0
  %73 = vmatpush1.msra.mxu0 0.0
  %74 = vmatprep.subr.mxu0 0.0
  %75 = vmatpush1.msra.mxu0 0.0
  %76 = vmatprep.subr.mxu0 0.0
  %77 = vmatpush1.msra.mxu0 0.0
  %78 = vmatprep.subr.mxu0 0.0
  %79 = vmatpush1.msra.mxu0 0.0
  %80 = vmatprep.subr.mxu0 0.0
  %81 = vmatpush1.msra.mxu0 0.0
  %82 = vmatprep.subr.mxu0 0.0
  %83 = vmatpush1.msra.mxu0 0.0
  %84 = vmatprep.subr.mxu0 0.0
  %85 = vmatpush1.msra.mxu0 0.0
  %86 = vmatprep.subr.mxu0 0.0
  %87 = vmatpush1.msra.mxu0 0.0
  %88 = vmatprep.subr.mxu0 0.0
  %89 = vmatpush1.msra.mxu0 0.0
  %90 = vmatprep.subr.mxu0 0.0
  %91 = vmatpush1.msra.mxu0 0.0
  %92 = vmatprep.subr.mxu0 0.0
  %93 = vmatpush1.msra.mxu0 0.0
  %94 = vmatprep.subr.mxu0 0.0
  %95 = vmatpush1.msra.mxu0 0.0
  %96 = vmatprep.subr.mxu0 0.0
  %97 = vmatpush1.msra.mxu0 0.0
  %98 = vmatprep.subr.mxu0 0.0
  %99 = vmatpush1.msra.mxu0 0.0
  %100 = vmatprep.mubr.f32.mxu0 0.0
  %101 = vmatmul.mubr.f32.gmra.mrb[0].mxu0 %v31
  %v102 = vpop.f32.mrb[0].mxu0
  %v103 = vadd.f32 %v28, %v102
  %v104 = vpop.f32.mrb[0].mxu0
  %105 = vmatprep.mubr.f32.mxu0 0.0
  %106 = vmatmul.mubr.f32.gmra.mrb[0].mxu0 %v34
  %v107 = vpop.f32.mrb[0].mxu0
  %v108 = vadd.f32 %v28, %v107
  %v109 = vpop.f32.mrb[0].mxu0
  %110 = vdwg.mxu0
  %vm111 = vcmask 261120
  %v113 = vsel %vm111, 0.0, 0
  %115 = vmatprep.subr.mxu0 0.0
  %116 = vmatpush1.msra.mxu0 %v12
  %117 = vmatprep.subr.mxu0 0.0
  %118 = vmatpush1.msra.mxu0 %v13
  %119 = vmatprep.subr.mxu0 0.0
  %120 = vmatpush1.msra.mxu0 %v14
  %121 = vmatprep.subr.mxu0 0.0
  %122 = vmatpush1.msra.mxu0 %v15
  %123 = vmatprep.subr.mxu0 0.0
  %124 = vmatpush1.msra.mxu0 0.0
  %125 = vmatprep.subr.mxu0 0.0
  %126 = vmatpush1.msra.mxu0 0.0
  %127 = vmatprep.subr.mxu0 0.0
  %128 = vmatpush1.msra.mxu0 0.0
  %129 = vmatprep.subr.mxu0 0.0
  %130 = vmatpush1.msra.mxu0 0.0
  %131 = vmatprep.subr.mxu0 0.0
  %132 = vmatpush1.msra.mxu0 0.0
  %133 = vmatprep.subr.mxu0 0.0
  %134 = vmatpush1.msra.mxu0 0.0
  %135 = vmatprep.subr.mxu0 0.0
  %136 = vmatpush1.msra.mxu0 0.0
  %137 = vmatprep.subr.mxu0 0.0
  %138 = vmatpush1.msra.mxu0 0.0
  %139 = vmatprep.subr.mxu0 0.0
  %140 = vmatpush1.msra.mxu0 0.0
  %141 = vmatprep.subr.mxu0 0.0
  %142 = vmatpush1.msra.mxu0 0.0
  %143 = vmatprep.subr.mxu0 0.0
  %144 = vmatpush1.msra.mxu0 0.0
  %145 = vmatprep.subr.mxu0 0.0
  %146 = vmatpush1.msra.mxu0 0.0
  %147 = vmatprep.subr.mxu0 0.0
  %148 = vmatpush1.msra.mxu0 0.0
  %149 = vmatprep.subr.mxu0 0.0
  %150 = vmatpush1.msra.mxu0 0.0
  %151 = vmatprep.subr.mxu0 0.0
  %152 = vmatpush1.msra.mxu0 0.0
  %153 = vmatprep.subr.mxu0 0.0
  %154 = vmatpush1.msra.mxu0 0.0
  %155 = vmatprep.subr.mxu0 0.0
  %156 = vmatpush1.msra.mxu0 0.0
  %157 = vmatprep.subr.mxu0 0.0
  %158 = vmatpush1.msra.mxu0 0.0
  %159 = vmatprep.subr.mxu0 0.0
  %160 = vmatpush1.msra.mxu0 0.0
  %161 = vmatprep.subr.mxu0 0.0
  %162 = vmatpush1.msra.mxu0 0.0
  %163 = vmatprep.subr.mxu0 0.0
  %164 = vmatpush1.msra.mxu0 0.0
  %165 = vmatprep.subr.mxu0 0.0
  %166 = vmatpush1.msra.mxu0 0.0
  %167 = vmatprep.subr.mxu0 0.0
  %168 = vmatpush1.msra.mxu0 0.0
  %169 = vmatprep.subr.mxu0 0.0
  %170 = vmatpush1.msra.mxu0 0.0
  %171 = vmatprep.subr.mxu0 0.0
  %172 = vmatpush1.msra.mxu0 0.0
  %173 = vmatprep.subr.mxu0 0.0
  %174 = vmatpush1.msra.mxu0 0.0
  %175 = vmatprep.subr.mxu0 0.0
  %176 = vmatpush1.msra.mxu0 0.0
  %177 = vmatprep.subr.mxu0 0.0
  %178 = vmatpush1.msra.mxu0 0.0
  %179 = vmatprep.mubr.f32.mxu0 0.0
  %180 = vmatmul.mubr.f32.gmra.mrb[0].mxu0 %v113
  %v181 = vpop.f32.mrb[0].mxu0
  %v182 = vadd.f32 0.0, %v181
  %v183 = vpop.f32.mrb[0].mxu0
  %184 = vdwg.mxu0
  %v185 = vadd.f32 %v103, %v182
  %v186 = vtanh.pop %v185
  %v188 = vsel %vm111, %v186, 0
  %190 = vmatprep.subr.mxu0 0.0
  %191 = vmatpush1.msra.mxu0 %v12
  %192 = vmatprep.subr.mxu0 0.0
  %193 = vmatpush1.msra.mxu0 %v13
  %194 = vmatprep.subr.mxu0 0.0
  %195 = vmatpush1.msra.mxu0 %v14
  %196 = vmatprep.subr.mxu0 0.0
  %197 = vmatpush1.msra.mxu0 %v15
  %198 = vmatprep.subr.mxu0 0.0
  %199 = vmatpush1.msra.mxu0 0.0
  %200 = vmatprep.subr.mxu0 0.0
  %201 = vmatpush1.msra.mxu0 0.0
  %202 = vmatprep.subr.mxu0 0.0
  %203 = vmatpush1.msra.mxu0 0.0
  %204 = vmatprep.subr.mxu0 0.0
  %205 = vmatpush1.msra.mxu0 0.0
  %206 = vmatprep.subr.mxu0 0.0
  %207 = vmatpush1.msra.mxu0 0.0
  %208 = vmatprep.subr.mxu0 0.0
  %209 = vmatpush1.msra.mxu0 0.0
  %210 = vmatprep.subr.mxu0 0.0
  %211 = vmatpush1.msra.mxu0 0.0
  %212 = vmatprep.subr.mxu0 0.0
  %213 = vmatpush1.msra.mxu0 0.0
  %214 = vmatprep.subr.mxu0 0.0
  %215 = vmatpush1.msra.mxu0 0.0
  %216 = vmatprep.subr.mxu0 0.0
  %217 = vmatpush1.msra.mxu0 0.0
  %218 = vmatprep.subr.mxu0 0.0
  %219 = vmatpush1.msra.mxu0 0.0
  %220 = vmatprep.subr.mxu0 0.0
  %221 = vmatpush1.msra.mxu0 0.0
  %222 = vmatprep.subr.mxu0 0.0
  %223 = vmatpush1.msra.mxu0 0.0
  %224 = vmatprep.subr.mxu0 0.0
  %225 = vmatpush1.msra.mxu0 0.0
  %226 = vmatprep.subr.mxu0 0.0
  %227 = vmatpush1.msra.mxu0 0.0
  %228 = vmatprep.subr.mxu0 0.0
  %229 = vmatpush1.msra.mxu0 0.0
  %230 = vmatprep.subr.mxu0 0.0
  %231 = vmatpush1.msra.mxu0 0.0
  %232 = vmatprep.subr.mxu0 0.0
  %233 = vmatpush1.msra.mxu0 0.0
  %234 = vmatprep.subr.mxu0 0.0
  %235 = vmatpush1.msra.mxu0 0.0
  %236 = vmatprep.subr.mxu0 0.0
  %237 = vmatpush1.msra.mxu0 0.0
  %238 = vmatprep.subr.mxu0 0.0
  %239 = vmatpush1.msra.mxu0 0.0
  %240 = vmatprep.subr.mxu0 0.0
  %241 = vmatpush1.msra.mxu0 0.0
  %242 = vmatprep.subr.mxu0 0.0
  %243 = vmatpush1.msra.mxu0 0.0
  %244 = vmatprep.subr.mxu0 0.0
  %245 = vmatpush1.msra.mxu0 0.0
  %246 = vmatprep.subr.mxu0 0.0
  %247 = vmatpush1.msra.mxu0 0.0
  %248 = vmatprep.subr.mxu0 0.0
  %249 = vmatpush1.msra.mxu0 0.0
  %250 = vmatprep.subr.mxu0 0.0
  %251 = vmatpush1.msra.mxu0 0.0
  %252 = vmatprep.subr.mxu0 0.0
  %253 = vmatpush1.msra.mxu0 0.0
  %254 = vmatprep.mubr.f32.mxu0 0.0
  %255 = vmatmul.mubr.f32.gmra.mrb[0].mxu0 %v188
  %v256 = vpop.f32.mrb[0].mxu0
  %v257 = vadd.f32 0.0, %v256
  %v258 = vpop.f32.mrb[0].mxu0
  %259 = vdwg.mxu0
  %v261 = vrot.slane %v257, 6
  %v263 = vadd.f32 %v103, %v261
  %v264 = vtanh.pop %v263
  %v266 = vrot.slane %v264, 2
  %v267 = vsel %vm111, %v266, 0
  %269 = vmatprep.subr.mxu0 0.0
  %270 = vmatpush1.msra.mxu0 %v12
  %271 = vmatprep.subr.mxu0 0.0
  %272 = vmatpush1.msra.mxu0 %v13
  %273 = vmatprep.subr.mxu0 0.0
  %274 = vmatpush1.msra.mxu0 %v14
  %275 = vmatprep.subr.mxu0 0.0
  %276 = vmatpush1.msra.mxu0 %v15
  %277 = vmatprep.subr.mxu0 0.0
  %278 = vmatpush1.msra.mxu0 0.0
  %279 = vmatprep.subr.mxu0 0.0
  %280 = vmatpush1.msra.mxu0 0.0
  %281 = vmatprep.subr.mxu0 0.0
  %282 = vmatpush1.msra.mxu0 0.0
  %283 = vmatprep.subr.mxu0 0.0
  %284 = vmatpush1.msra.mxu0 0.0
  %285 = vmatprep.subr.mxu0 0.0
  %286 = vmatpush1.msra.mxu0 0.0
  %287 = vmatprep.subr.mxu0 0.0
  %288 = vmatpush1.msra.mxu0 0.0
  %289 = vmatprep.subr.mxu0 0.0
  %290 = vmatpush1.msra.mxu0 0.0
  %291 = vmatprep.subr.mxu0 0.0
  %292 = vmatpush1.msra.mxu0 0.0
  %293 = vmatprep.subr.mxu0 0.0
  %294 = vmatpush1.msra.mxu0 0.0
  %295 = vmatprep.subr.mxu0 0.0
  %296 = vmatpush1.msra.mxu0 0.0
  %297 = vmatprep.subr.mxu0 0.0
  %298 = vmatpush1.msra.mxu0 0.0
  %299 = vmatprep.subr.mxu0 0.0
  %300 = vmatpush1.msra.mxu0 0.0
  %301 = vmatprep.subr.mxu0 0.0
  %302 = vmatpush1.msra.mxu0 0.0
  %303 = vmatprep.subr.mxu0 0.0
  %304 = vmatpush1.msra.mxu0 0.0
  %305 = vmatprep.subr.mxu0 0.0
  %306 = vmatpush1.msra.mxu0 0.0
  %307 = vmatprep.subr.mxu0 0.0
  %308 = vmatpush1.msra.mxu0 0.0
  %309 = vmatprep.subr.mxu0 0.0
  %310 = vmatpush1.msra.mxu0 0.0
  %311 = vmatprep.subr.mxu0 0.0
  %312 = vmatpush1.msra.mxu0 0.0
  %313 = vmatprep.subr.mxu0 0.0
  %314 = vmatpush1.msra.mxu0 0.0
  %315 = vmatprep.subr.mxu0 0.0
  %316 = vmatpush1.msra.mxu0 0.0
  %317 = vmatprep.subr.mxu0 0.0
  %318 = vmatpush1.msra.mxu0 0.0
  %319 = vmatprep.subr.mxu0 0.0
  %320 = vmatpush1.msra.mxu0 0.0
  %321 = vmatprep.subr.mxu0 0.0
  %322 = vmatpush1.msra.mxu0 0.0
  %323 = vmatprep.subr.mxu0 0.0
  %324 = vmatpush1.msra.mxu0 0.0
  %325 = vmatprep.subr.mxu0 0.0
  %326 = vmatpush1.msra.mxu0 0.0
  %327 = vmatprep.subr.mxu0 0.0
  %328 = vmatpush1.msra.mxu0 0.0
  %329 = vmatprep.subr.mxu0 0.0
  %330 = vmatpush1.msra.mxu0 0.0
  %331 = vmatprep.subr.mxu0 0.0
  %332 = vmatpush1.msra.mxu0 0.0
  %333 = vmatprep.mubr.f32.mxu0 0.0
  %334 = vmatmul.mubr.f32.gmra.mrb[0].mxu0 %v267
  %v335 = vpop.f32.mrb[0].mxu0
  %v336 = vadd.f32 0.0, %v335
  %v337 = vpop.f32.mrb[0].mxu0
  %338 = vdwg.mxu0
  %v340 = vrot.slane %v336, 4
  %v342 = vadd.f32 %v103, %v340
  %v343 = vtanh.pop %v342
  %v345 = vrot.slane %v343, 4
  %v346 = vsel %vm111, %v345, 0
  %348 = vmatprep.subr.mxu0 0.0
  %349 = vmatpush1.msra.mxu0 %v12
  %350 = vmatprep.subr.mxu0 0.0
  %351 = vmatpush1.msra.mxu0 %v13
  %352 = vmatprep.subr.mxu0 0.0
  %353 = vmatpush1.msra.mxu0 %v14
  %354 = vmatprep.subr.mxu0 0.0
  %355 = vmatpush1.msra.mxu0 %v15
  %356 = vmatprep.subr.mxu0 0.0
  %357 = vmatpush1.msra.mxu0 0.0
  %358 = vmatprep.subr.mxu0 0.0
  %359 = vmatpush1.msra.mxu0 0.0
  %360 = vmatprep.subr.mxu0 0.0
  %361 = vmatpush1.msra.mxu0 0.0
  %362 = vmatprep.subr.mxu0 0.0
  %363 = vmatpush1.msra.mxu0 0.0
  %364 = vmatprep.subr.mxu0 0.0
  %365 = vmatpush1.msra.mxu0 0.0
  %366 = vmatprep.subr.mxu0 0.0
  %367 = vmatpush1.msra.mxu0 0.0
  %368 = vmatprep.subr.mxu0 0.0
  %369 = vmatpush1.msra.mxu0 0.0
  %370 = vmatprep.subr.mxu0 0.0
  %371 = vmatpush1.msra.mxu0 0.0
  %372 = vmatprep.subr.mxu0 0.0
  %373 = vmatpush1.msra.mxu0 0.0
  %374 = vmatprep.subr.mxu0 0.0
  %375 = vmatpush1.msra.mxu0 0.0
  %376 = vmatprep.subr.mxu0 0.0
  %377 = vmatpush1.msra.mxu0 0.0
  %378 = vmatprep.subr.mxu0 0.0
  %379 = vmatpush1.msra.mxu0 0.0
  %380 = vmatprep.subr.mxu0 0.0
  %381 = vmatpush1.msra.mxu0 0.0
  %382 = vmatprep.subr.mxu0 0.0
  %383 = vmatpush1.msra.mxu0 0.0
  %384 = vmatprep.subr.mxu0 0.0
  %385 = vmatpush1.msra.mxu0 0.0
  %386 = vmatprep.subr.mxu0 0.0
  %387 = vmatpush1.msra.mxu0 0.0
  %388 = vmatprep.subr.mxu0 0.0
  %389 = vmatpush1.msra.mxu0 0.0
  %390 = vmatprep.subr.mxu0 0.0
  %391 = vmatpush1.msra.mxu0 0.0
  %392 = vmatprep.subr.mxu0 0.0
  %393 = vmatpush1.msra.mxu0 0.0
  %394 = vmatprep.subr.mxu0 0.0
  %395 = vmatpush1.msra.mxu0 0.0
  %396 = vmatprep.subr.mxu0 0.0
  %397 = vmatpush1.msra.mxu0 0.0
  %398 = vmatprep.subr.mxu0 0.0
  %399 = vmatpush1.msra.mxu0 0.0
  %400 = vmatprep.subr.mxu0 0.0
  %401 = vmatpush1.msra.mxu0 0.0
  %402 = vmatprep.subr.mxu0 0.0
  %403 = vmatpush1.msra.mxu0 0.0
  %404 = vmatprep.subr.mxu0 0.0
  %405 = vmatpush1.msra.mxu0 0.0
  %406 = vmatprep.subr.mxu0 0.0
  %407 = vmatpush1.msra.mxu0 0.0
  %408 = vmatprep.subr.mxu0 0.0
  %409 = vmatpush1.msra.mxu0 0.0
  %410 = vmatprep.subr.mxu0 0.0
  %411 = vmatpush1.msra.mxu0 0.0
  %412 = vmatprep.mubr.f32.mxu0 0.0
  %413 = vmatmul.mubr.f32.gmra.mrb[0].mxu0 %v346
  %v414 = vpop.f32.mrb[0].mxu0
  %v415 = vadd.f32 0.0, %v414
  %v416 = vpop.f32.mrb[0].mxu0
  %417 = vdwg.mxu0
  %v419 = vrot.slane %v415, 2
  %v421 = vadd.f32 %v103, %v419
  %v422 = vtanh.pop %v421
  %v424 = vrot.slane %v422, 6
  %v425 = vsel %vm111, %v424, 0
  %427 = vmatprep.subr.mxu0 0.0
  %428 = vmatpush1.msra.mxu0 %v12
  %429 = vmatprep.subr.mxu0 0.0
  %430 = vmatpush1.msra.mxu0 %v13
  %431 = vmatprep.subr.mxu0 0.0
  %432 = vmatpush1.msra.mxu0 %v14
  %433 = vmatprep.subr.mxu0 0.0
  %434 = vmatpush1.msra.mxu0 %v15
  %435 = vmatprep.subr.mxu0 0.0
  %436 = vmatpush1.msra.mxu0 0.0
  %437 = vmatprep.subr.mxu0 0.0
  %438 = vmatpush1.msra.mxu0 0.0
  %439 = vmatprep.subr.mxu0 0.0
  %440 = vmatpush1.msra.mxu0 0.0
  %441 = vmatprep.subr.mxu0 0.0
  %442 = vmatpush1.msra.mxu0 0.0
  %443 = vmatprep.subr.mxu0 0.0
  %444 = vmatpush1.msra.mxu0 0.0
  %445 = vmatprep.subr.mxu0 0.0
  %446 = vmatpush1.msra.mxu0 0.0
  %447 = vmatprep.subr.mxu0 0.0
  %448 = vmatpush1.msra.mxu0 0.0
  %449 = vmatprep.subr.mxu0 0.0
  %450 = vmatpush1.msra.mxu0 0.0
  %451 = vmatprep.subr.mxu0 0.0
  %452 = vmatpush1.msra.mxu0 0.0
  %453 = vmatprep.subr.mxu0 0.0
  %454 = vmatpush1.msra.mxu0 0.0
  %455 = vmatprep.subr.mxu0 0.0
  %456 = vmatpush1.msra.mxu0 0.0
  %457 = vmatprep.subr.mxu0 0.0
  %458 = vmatpush1.msra.mxu0 0.0
  %459 = vmatprep.subr.mxu0 0.0
  %460 = vmatpush1.msra.mxu0 0.0
  %461 = vmatprep.subr.mxu0 0.0
  %462 = vmatpush1.msra.mxu0 0.0
  %463 = vmatprep.subr.mxu0 0.0
  %464 = vmatpush1.msra.mxu0 0.0
  %465 = vmatprep.subr.mxu0 0.0
  %466 = vmatpush1.msra.mxu0 0.0
  %467 = vmatprep.subr.mxu0 0.0
  %468 = vmatpush1.msra.mxu0 0.0
  %469 = vmatprep.subr.mxu0 0.0
  %470 = vmatpush1.msra.mxu0 0.0
  %471 = vmatprep.subr.mxu0 0.0
  %472 = vmatpush1.msra.mxu0 0.0
  %473 = vmatprep.subr.mxu0 0.0
  %474 = vmatpush1.msra.mxu0 0.0
  %475 = vmatprep.subr.mxu0 0.0
  %476 = vmatpush1.msra.mxu0 0.0
  %477 = vmatprep.subr.mxu0 0.0
  %478 = vmatpush1.msra.mxu0 0.0
  %479 = vmatprep.subr.mxu0 0.0
  %480 = vmatpush1.msra.mxu0 0.0
  %481 = vmatprep.subr.mxu0 0.0
  %482 = vmatpush1.msra.mxu0 0.0
  %483 = vmatprep.subr.mxu0 0.0
  %484 = vmatpush1.msra.mxu0 0.0
  %485 = vmatprep.subr.mxu0 0.0
  %486 = vmatpush1.msra.mxu0 0.0
  %487 = vmatprep.subr.mxu0 0.0
  %488 = vmatpush1.msra.mxu0 0.0
  %489 = vmatprep.subr.mxu0 0.0
  %490 = vmatpush1.msra.mxu0 0.0
  %491 = vmatprep.mubr.f32.mxu0 0.0
  %492 = vmatmul.mubr.f32.gmra.mrb[0].mxu0 %v425
  %v493 = vpop.f32.mrb[0].mxu0
  %v494 = vadd.f32 0.0, %v493
  %v495 = vpop.f32.mrb[0].mxu0
  %496 = vdwg.mxu0
  %v497 = vadd.f32 %v108, %v494
  %v498 = vtanh.pop %v497
  %v500 = vsel %vm111, %v498, 0
  %502 = vmatprep.subr.mxu0 0.0
  %503 = vmatpush1.msra.mxu0 %v12
  %504 = vmatprep.subr.mxu0 0.0
  %505 = vmatpush1.msra.mxu0 %v13
  %506 = vmatprep.subr.mxu0 0.0
  %507 = vmatpush1.msra.mxu0 %v14
  %508 = vmatprep.subr.mxu0 0.0
  %509 = vmatpush1.msra.mxu0 %v15
  %510 = vmatprep.subr.mxu0 0.0
  %511 = vmatpush1.msra.mxu0 0.0
  %512 = vmatprep.subr.mxu0 0.0
  %513 = vmatpush1.msra.mxu0 0.0
  %514 = vmatprep.subr.mxu0 0.0
  %515 = vmatpush1.msra.mxu0 0.0
  %516 = vmatprep.subr.mxu0 0.0
  %517 = vmatpush1.msra.mxu0 0.0
  %518 = vmatprep.subr.mxu0 0.0
  %519 = vmatpush1.msra.mxu0 0.0
  %520 = vmatprep.subr.mxu0 0.0
  %521 = vmatpush1.msra.mxu0 0.0
  %522 = vmatprep.subr.mxu0 0.0
  %523 = vmatpush1.msra.mxu0 0.0
  %524 = vmatprep.subr.mxu0 0.0
  %525 = vmatpush1.msra.mxu0 0.0
  %526 = vmatprep.subr.mxu0 0.0
  %527 = vmatpush1.msra.mxu0 0.0
  %528 = vmatprep.subr.mxu0 0.0
  %529 = vmatpush1.msra.mxu0 0.0
  %530 = vmatprep.subr.mxu0 0.0
  %531 = vmatpush1.msra.mxu0 0.0
  %532 = vmatprep.subr.mxu0 0.0
  %533 = vmatpush1.msra.mxu0 0.0
  %534 = vmatprep.subr.mxu0 0.0
  %535 = vmatpush1.msra.mxu0 0.0
  %536 = vmatprep.subr.mxu0 0.0
  %537 = vmatpush1.msra.mxu0 0.0
  %538 = vmatprep.subr.mxu0 0.0
  %539 = vmatpush1.msra.mxu0 0.0
  %540 = vmatprep.subr.mxu0 0.0
  %541 = vmatpush1.msra.mxu0 0.0
  %542 = vmatprep.subr.mxu0 0.0
  %543 = vmatpush1.msra.mxu0 0.0
  %544 = vmatprep.subr.mxu0 0.0
  %545 = vmatpush1.msra.mxu0 0.0
  %546 = vmatprep.subr.mxu0 0.0
  %547 = vmatpush1.msra.mxu0 0.0
  %548 = vmatprep.subr.mxu0 0.0
  %549 = vmatpush1.msra.mxu0 0.0
  %550 = vmatprep.subr.mxu0 0.0
  %551 = vmatpush1.msra.mxu0 0.0
  %552 = vmatprep.subr.mxu0 0.0
  %553 = vmatpush1.msra.mxu0 0.0
  %554 = vmatprep.subr.mxu0 0.0
  %555 = vmatpush1.msra.mxu0 0.0
  %556 = vmatprep.subr.mxu0 0.0
  %557 = vmatpush1.msra.mxu0 0.0
  %558 = vmatprep.subr.mxu0 0.0
  %559 = vmatpush1.msra.mxu0 0.0
  %560 = vmatprep.subr.mxu0 0.0
  %561 = vmatpush1.msra.mxu0 0.0
  %562 = vmatprep.subr.mxu0 0.0
  %563 = vmatpush1.msra.mxu0 0.0
  %564 = vmatprep.subr.mxu0 0.0
  %565 = vmatpush1.msra.mxu0 0.0
  %566 = vmatprep.mubr.f32.mxu0 0.0
  %567 = vmatmul.mubr.f32.gmra.mrb[0].mxu0 %v500
  %v568 = vpop.f32.mrb[0].mxu0
  %v569 = vadd.f32 0.0, %v568
  %v570 = vpop.f32.mrb[0].mxu0
  %571 = vdwg.mxu0
  %v573 = vrot.slane %v569, 6
  %v575 = vadd.f32 %v108, %v573
  %v576 = vtanh.pop %v575
  %v578 = vrot.slane %v576, 2
  %v579 = vsel %vm111, %v578, 0
  %581 = vmatprep.subr.mxu0 0.0
  %582 = vmatpush1.msra.mxu0 %v12
  %583 = vmatprep.subr.mxu0 0.0
  %584 = vmatpush1.msra.mxu0 %v13
  %585 = vmatprep.subr.mxu0 0.0
  %586 = vmatpush1.msra.mxu0 %v14
  %587 = vmatprep.subr.mxu0 0.0
  %588 = vmatpush1.msra.mxu0 %v15
  %589 = vmatprep.subr.mxu0 0.0
  %590 = vmatpush1.msra.mxu0 0.0
  %591 = vmatprep.subr.mxu0 0.0
  %592 = vmatpush1.msra.mxu0 0.0
  %593 = vmatprep.subr.mxu0 0.0
  %594 = vmatpush1.msra.mxu0 0.0
  %595 = vmatprep.subr.mxu0 0.0
  %596 = vmatpush1.msra.mxu0 0.0
  %597 = vmatprep.subr.mxu0 0.0
  %598 = vmatpush1.msra.mxu0 0.0
  %599 = vmatprep.subr.mxu0 0.0
  %600 = vmatpush1.msra.mxu0 0.0
  %601 = vmatprep.subr.mxu0 0.0
  %602 = vmatpush1.msra.mxu0 0.0
  %603 = vmatprep.subr.mxu0 0.0
  %604 = vmatpush1.msra.mxu0 0.0
  %605 = vmatprep.subr.mxu0 0.0
  %606 = vmatpush1.msra.mxu0 0.0
  %607 = vmatprep.subr.mxu0 0.0
  %608 = vmatpush1.msra.mxu0 0.0
  %609 = vmatprep.subr.mxu0 0.0
  %610 = vmatpush1.msra.mxu0 0.0
  %611 = vmatprep.subr.mxu0 0.0
  %612 = vmatpush1.msra.mxu0 0.0
  %613 = vmatprep.subr.mxu0 0.0
  %614 = vmatpush1.msra.mxu0 0.0
  %615 = vmatprep.subr.mxu0 0.0
  %616 = vmatpush1.msra.mxu0 0.0
  %617 = vmatprep.subr.mxu0 0.0
  %618 = vmatpush1.msra.mxu0 0.0
  %619 = vmatprep.subr.mxu0 0.0
  %620 = vmatpush1.msra.mxu0 0.0
  %621 = vmatprep.subr.mxu0 0.0
  %622 = vmatpush1.msra.mxu0 0.0
  %623 = vmatprep.subr.mxu0 0.0
  %624 = vmatpush1.msra.mxu0 0.0
  %625 = vmatprep.subr.mxu0 0.0
  %626 = vmatpush1.msra.mxu0 0.0
  %627 = vmatprep.subr.mxu0 0.0
  %628 = vmatpush1.msra.mxu0 0.0
  %629 = vmatprep.subr.mxu0 0.0
  %630 = vmatpush1.msra.mxu0 0.0
  %631 = vmatprep.subr.mxu0 0.0
  %632 = vmatpush1.msra.mxu0 0.0
  %633 = vmatprep.subr.mxu0 0.0
  %634 = vmatpush1.msra.mxu0 0.0
  %635 = vmatprep.subr.mxu0 0.0
  %636 = vmatpush1.msra.mxu0 0.0
  %637 = vmatprep.subr.mxu0 0.0
  %638 = vmatpush1.msra.mxu0 0.0
  %639 = vmatprep.subr.mxu0 0.0
  %640 = vmatpush1.msra.mxu0 0.0
  %641 = vmatprep.subr.mxu0 0.0
  %642 = vmatpush1.msra.mxu0 0.0
  %643 = vmatprep.subr.mxu0 0.0
  %644 = vmatpush1.msra.mxu0 0.0
  %645 = vmatprep.mubr.f32.mxu0 0.0
  %646 = vmatmul.mubr.f32.gmra.mrb[0].mxu0 %v579
  %v647 = vpop.f32.mrb[0].mxu0
  %v648 = vadd.f32 0.0, %v647
  %v649 = vpop.f32.mrb[0].mxu0
  %650 = vdwg.mxu0
  %v652 = vrot.slane %v648, 4
  %v654 = vadd.f32 %v108, %v652
  %v655 = vtanh.pop %v654
  %v657 = vrot.slane %v655, 4
  %v658 = vsel %vm111, %v657, 0
  %660 = vmatprep.subr.mxu0 0.0
  %661 = vmatpush1.msra.mxu0 %v12
  %662 = vmatprep.subr.mxu0 0.0
  %663 = vmatpush1.msra.mxu0 %v13
  %664 = vmatprep.subr.mxu0 0.0
  %665 = vmatpush1.msra.mxu0 %v14
  %666 = vmatprep.subr.mxu0 0.0
  %667 = vmatpush1.msra.mxu0 %v15
  %668 = vmatprep.subr.mxu0 0.0
  %669 = vmatpush1.msra.mxu0 0.0
  %670 = vmatprep.subr.mxu0 0.0
  %671 = vmatpush1.msra.mxu0 0.0
  %672 = vmatprep.subr.mxu0 0.0
  %673 = vmatpush1.msra.mxu0 0.0
  %674 = vmatprep.subr.mxu0 0.0
  %675 = vmatpush1.msra.mxu0 0.0
  %676 = vmatprep.subr.mxu0 0.0
  %677 = vmatpush1.msra.mxu0 0.0
  %678 = vmatprep.subr.mxu0 0.0
  %679 = vmatpush1.msra.mxu0 0.0
  %680 = vmatprep.subr.mxu0 0.0
  %681 = vmatpush1.msra.mxu0 0.0
  %682 = vmatprep.subr.mxu0 0.0
  %683 = vmatpush1.msra.mxu0 0.0
  %684 = vmatprep.subr.mxu0 0.0
  %685 = vmatpush1.msra.mxu0 0.0
  %686 = vmatprep.subr.mxu0 0.0
  %687 = vmatpush1.msra.mxu0 0.0
  %688 = vmatprep.subr.mxu0 0.0
  %689 = vmatpush1.msra.mxu0 0.0
  %690 = vmatprep.subr.mxu0 0.0
  %691 = vmatpush1.msra.mxu0 0.0
  %692 = vmatprep.subr.mxu0 0.0
  %693 = vmatpush1.msra.mxu0 0.0
  %694 = vmatprep.subr.mxu0 0.0
  %695 = vmatpush1.msra.mxu0 0.0
  %696 = vmatprep.subr.mxu0 0.0
  %697 = vmatpush1.msra.mxu0 0.0
  %698 = vmatprep.subr.mxu0 0.0
  %699 = vmatpush1.msra.mxu0 0.0
  %700 = vmatprep.subr.mxu0 0.0
  %701 = vmatpush1.msra.mxu0 0.0
  %702 = vmatprep.subr.mxu0 0.0
  %703 = vmatpush1.msra.mxu0 0.0
  %704 = vmatprep.subr.mxu0 0.0
  %705 = vmatpush1.msra.mxu0 0.0
  %706 = vmatprep.subr.mxu0 0.0
  %707 = vmatpush1.msra.mxu0 0.0
  %708 = vmatprep.subr.mxu0 0.0
  %709 = vmatpush1.msra.mxu0 0.0
  %710 = vmatprep.subr.mxu0 0.0
  %711 = vmatpush1.msra.mxu0 0.0
  %712 = vmatprep.subr.mxu0 0.0
  %713 = vmatpush1.msra.mxu0 0.0
  %714 = vmatprep.subr.mxu0 0.0
  %715 = vmatpush1.msra.mxu0 0.0
  %716 = vmatprep.subr.mxu0 0.0
  %717 = vmatpush1.msra.mxu0 0.0
  %718 = vmatprep.subr.mxu0 0.0
  %719 = vmatpush1.msra.mxu0 0.0
  %720 = vmatprep.subr.mxu0 0.0
  %721 = vmatpush1.msra.mxu0 0.0
  %722 = vmatprep.subr.mxu0 0.0
  %723 = vmatpush1.msra.mxu0 0.0
  %724 = vmatprep.mubr.f32.mxu0 0.0
  %725 = vmatmul.mubr.f32.gmra.mrb[0].mxu0 %v658
  %v726 = vpop.f32.mrb[0].mxu0
  %v727 = vadd.f32 0.0, %v726
  %v728 = vpop.f32.mrb[0].mxu0
  %729 = vdwg.mxu0
  %v731 = vrot.slane %v727, 2
  %v733 = vadd.f32 %v108, %v731
  %v734 = vtanh.pop %v733
  %v735 = vlaneseq
  %v736 = vshrl.u32 %v735, 7
  %v737 = vsub.s32 0, %v736
  %v738 = vrot.slane %v21, %v737
  %v739 = vmul.f32 %v734, %v738
  %vm740 = vcmask 261126
  %v741 = vsel %vm740, %v739, 0.0
  %742 = vadd.xlane.f32.xlu0 %v741
  %v743 = vpop.xlane.xlu0 %742
  %v744 = vadd.f32 %v743, %v28
  %v745 = vsub.f32 0.0, %v744
  %v746 = vmul.f32 %v745, 1.442695
  %v747 = vpow.pop %v746
  %v748 = vadd.f32 %v747, 1.0
  %v749 = vrcp.pop %v748
  %v750 = vmul.f32 1.0, %v749
  %v751 = vsub.f32 1.0, %v750
  %vm752 = vcmask 244736
  %v754 = vsel %vm752, %v24, 0
  %vm756 = vcmask 1045504
  %v758 = vsel %vm756, %v19, 0
  %760 = vmatprep.subr.mxu0 0.0
  %761 = vmatpush1.msra.mxu0 %v16
  %762 = vmatprep.subr.mxu0 0.0
  %763 = vmatpush1.msra.mxu0 %v17
  %764 = vmatprep.subr.mxu0 0.0
  %765 = vmatpush1.msra.mxu0 %v18
  %766 = vmatprep.subr.mxu0 0.0
  %767 = vmatpush1.msra.mxu0 %v758
  %768 = vmatprep.subr.mxu0 0.0
  %769 = vmatpush1.msra.mxu0 0.0
  %770 = vmatprep.subr.mxu0 0.0
  %771 = vmatpush1.msra.mxu0 0.0
  %772 = vmatprep.subr.mxu0 0.0
  %773 = vmatpush1.msra.mxu0 0.0
  %774 = vmatprep.subr.mxu0 0.0
  %775 = vmatpush1.msra.mxu0 0.0
  %776 = vmatprep.subr.mxu0 0.0
  %777 = vmatpush1.msra.mxu0 0.0
  %778 = vmatprep.subr.mxu0 0.0
  %779 = vmatpush1.msra.mxu0 0.0
  %780 = vmatprep.subr.mxu0 0.0
  %781 = vmatpush1.msra.mxu0 0.0
  %782 = vmatprep.subr.mxu0 0.0
  %783 = vmatpush1.msra.mxu0 0.0
  %784 = vmatprep.subr.mxu0 0.0
  %785 = vmatpush1.msra.mxu0 0.0
  %786 = vmatprep.subr.mxu0 0.0
  %787 = vmatpush1.msra.mxu0 0.0
  %788 = vmatprep.subr.mxu0 0.0
  %789 = vmatpush1.msra.mxu0 0.0
  %790 = vmatprep.subr.mxu0 0.0
  %791 = vmatpush1.msra.mxu0 0.0
  %792 = vmatprep.subr.mxu0 0.0
  %793 = vmatpush1.msra.mxu0 0.0
  %794 = vmatprep.subr.mxu0 0.0
  %795 = vmatpush1.msra.mxu0 0.0
  %796 = vmatprep.subr.mxu0 0.0
  %797 = vmatpush1.msra.mxu0 0.0
  %798 = vmatprep.subr.mxu0 0.0
  %799 = vmatpush1.msra.mxu0 0.0
  %800 = vmatprep.subr.mxu0 0.0
  %801 = vmatpush1.msra.mxu0 0.0
  %802 = vmatprep.subr.mxu0 0.0
  %803 = vmatpush1.msra.mxu0 0.0
  %804 = vmatprep.subr.mxu0 0.0
  %805 = vmatpush1.msra.mxu0 0.0
  %806 = vmatprep.subr.mxu0 0.0
  %807 = vmatpush1.msra.mxu0 0.0
  %808 = vmatprep.subr.mxu0 0.0
  %809 = vmatpush1.msra.mxu0 0.0
  %810 = vmatprep.subr.mxu0 0.0
  %811 = vmatpush1.msra.mxu0 0.0
  %812 = vmatprep.subr.mxu0 0.0
  %813 = vmatpush1.msra.mxu0 0.0
  %814 = vmatprep.subr.mxu0 0.0
  %815 = vmatpush1.msra.mxu0 0.0
  %816 = vmatprep.subr.mxu0 0.0
  %817 = vmatpush1.msra.mxu0 0.0
  %818 = vmatprep.subr.mxu0 0.0
  %819 = vmatpush1.msra.mxu0 0.0
  %820 = vmatprep.subr.mxu0 0.0
  %821 = vmatpush1.msra.mxu0 0.0
  %822 = vmatprep.subr.mxu0 0.0
  %823 = vmatpush1.msra.mxu0 0.0
  %824 = vmatprep.mubr.f32.mxu0 0.0
  %825 = vmatmul.mubr.f32.gmra.mrb[0].mxu0 %v754
  %v826 = vpop.f32.mrb[0].mxu0
  %v827 = vadd.f32 0.0, %v826
  %v828 = vpop.f32.mrb[0].mxu0
  %829 = vdwg.mxu0
  %831 = vset.pattern.permute.xlu0 64
  %832 = vperm.xlu0 %831, %v750
  %v833 = vpop.permute.xlu0 %832
  %v836 = vrot.slane %v827, 2
  %v838 = vmul.f32 %v833, %v836
  %840 = vset.pattern.permute.xlu0 64
  %841 = vperm.xlu0 %840, %v751
  %v842 = vpop.permute.xlu0 %841
  %844 = vrot.lane.b32.xlu0 %v836, 96
  %v845 = vpop.permute.xlu0 %844
  %v847 = vmul.f32 %v842, %v845
  %v848 = vadd.f32 %v838, %v847
  %849 = vrot.lane.b32.xlu0 %v836, 64
  %v850 = vpop.permute.xlu0 %849
  %v852 = vadd.f32 %v848, %v850
  %854 = vrot.lane.b32.xlu0 %v28, 96
  %v855 = vpop.permute.xlu0 %854
  %v857 = vadd.f32 %v852, %v855
  %v858 = vrot.slane %v24, 2
  %v860 = vmul.f32 %v833, %v858
  %861 = vrot.lane.b32.xlu0 %v858, 118
  %v862 = vpop.permute.xlu0 %861
  %v864 = vmul.f32 %v842, %v862
  %v865 = vadd.f32 %v860, %v864
  %vm866 = vcmask 130054
  %v867 = vsel %vm866, %v857, -inf
  %868 = vmax.xlane.f32.xlu0 %v867
  %v869 = vpop.xlane.xlu0 %868
  %v870 = vsub.f32 %v857, %v869
  %v871 = vmul.f32 %v870, 1.442695
  %v872 = vpow.pop %v871
  %vm873 = vcmask 261254
  %v874 = vsel %vm873, %v857, -inf
  %875 = vmax.xlane.f32.xlu0 %v874
  %v876 = vpop.xlane.xlu0 %875
  %v877 = vsub.f32 %v857, %v876
  %v878 = vmul.f32 %v877, 1.442695
  %v879 = vpow.pop %v878
  %v880 = vsel %vm866, %v872, 0.0
  %881 = vadd.xlane.f32.xlu0 %v880
  %v882 = vpop.xlane.xlu0 %881
  %v883 = vrcp.pop %v882
  %v884 = vmul.f32 %v872, %v883
  %886 = vrot.lane.b32.xlu0 %v879, 112
  %v887 = vpop.permute.xlu0 %886
  %v889 = vsel %vm866, %v887, 0.0
  %890 = vadd.xlane.f32.xlu0 %v889
  %v891 = vpop.xlane.xlu0 %890
  %v892 = vrcp.pop %v891
  %v893 = vmul.f32 %v879, %v892
  %894 = vst.msk [vmem:[%s2 - $0x6] sm:$0xc0] %vm866, %v884
  %895 = vst.msk [vmem:[%s2 - $0x6] sm:$0xc0] %vm873, %v893
  %897 = vrot.lane.b32.xlu0 %v865, 32
  %v898 = vpop.permute.xlu0 %897
  %vm900 = vcmask 343302
  %901 = vst.msk [vmem:[%s2 - $0x6] sm:$0xc0] %vm900, %v898
  // Predicated region
  $region10: #{dqn_cat_forward.1} parent=0 // pred_check
    _
  $region11: #{dqn_cat_forward.1} parent=0 // pred_check_branch
    %903 = sbr.rel (0) target = $region13
  $region12: #{dqn_cat_forward.1} parent=0 // pred_region
    _
  $region13: #{dqn_cat_forward.1} parent=0 // pred_fallthru
    _
  // Predicated region
  $region14: #{dqn_cat_forward.1} parent=0 // pred_check
    _
  $region15: #{dqn_cat_forward.1} parent=0 // pred_check_branch
    %905 = sbr.rel (0) target = $region17
  $region16: #{dqn_cat_forward.1} parent=0 // pred_region
    _
  $region17: #{dqn_cat_forward.1} parent=0 // pred_fallthru
    _

</llo_original>
